<compile_context>
chip_gen: v7x
topology: tpu7x:2x2x1
jax: 0.10.0
libtpu: 0.0.40
codegen_flags: <defaults>
</compile_context>

<pallas_src>
import functools
import math

import jax
import jax.numpy as jnp
from jax.experimental import pallas as pl
from jax.experimental.pallas import tpu as pltpu


# ----------------------------------------------------------------------------
# In-kernel integer hash (splitmix32 finalizer) in pure wrapping int32 math.
# Arithmetic shift + mask emulates a logical right shift, so no unsigned dtypes
# or TPU-only PRNG primitives are needed.
# ----------------------------------------------------------------------------
_GOLDEN_I32 = -1640531527        # 0x9E3779B9 as two's-complement int32
_MIX_C1_I32 = 0x7FEB352D         # 2146121005
_MIX_C2_I32 = -2073270645        # 0x846CA68B as two's-complement int32


def _mix32(x):
    x = x ^ ((x >> 16) & jnp.int32(0xFFFF))
    x = x * jnp.int32(_MIX_C1_I32)
    x = x ^ ((x >> 15) & jnp.int32(0x1FFFF))
    x = x * jnp.int32(_MIX_C2_I32)
    x = x ^ ((x >> 16) & jnp.int32(0xFFFF))
    return x


# ----------------------------------------------------------------------------
# Kernels
# ----------------------------------------------------------------------------
def _pe_add_kernel(x_ref, pe_ref, o_ref):
    # Eval / p == 0 path: plain broadcast add, no RNG compiled in.
    o_ref[...] = (x_ref[...] + pe_ref[...]).astype(o_ref.dtype)


def _pe_dropout_kernel(seed_ref, x_ref, pe_ref, o_ref, *, p):
    # x_ref: (bt, D) tile of the flattened (B, C*L) input; pe_ref: (1, D).
    bt, d = x_ref.shape
    y = x_ref[...].astype(jnp.float32) + pe_ref[...]

    # Counter-based dropout mask: hash(global element index ^ mixed seed).
    row0 = pl.program_id(0) * bt
    rows = jax.lax.broadcasted_iota(jnp.int32, (bt, d), 0) + row0
    cols = jax.lax.broadcasted_iota(jnp.int32, (bt, d), 1)
    lin = rows * d + cols
    seed = seed_ref[0] * jnp.int32(_GOLDEN_I32)
    bits = _mix32(lin ^ seed)

    # Hashed bits are ~uniform over all 2^32 int32 patterns; keep iff
    # bits >= threshold, with threshold chosen so P(keep) = 1 - p.
    thresh = int(round(p * (2.0 ** 32))) - (1 << 31)
    thresh = max(-(1 << 31), min(thresh, (1 << 31) - 1))
    keep = bits >= jnp.int32(thresh)

    scale = jnp.float32(1.0 / (1.0 - p))
    y = jnp.where(keep, y * scale, jnp.float32(0.0))
    o_ref[...] = y.astype(o_ref.dtype)


# ----------------------------------------------------------------------------
# PE buffer (identical math to the torch __init__)
# ----------------------------------------------------------------------------
def make_positional_encoding_buffer(d_model, max_len=128, dtype=jnp.float32):
    position = jnp.arange(0.0, max_len, dtype=jnp.float32)[:, None]        # (max_len, 1)
    div_term = jnp.exp(
        jnp.arange(0.0, d_model, 2.0, dtype=jnp.float32)
        * (-(math.log(10000.0) / d_model))
    )                                                                       # (d_model//2,)
    pe = jnp.zeros((max_len, d_model), dtype=jnp.float32)
    pe = pe.at[:, 0::2].set(jnp.sin(position * div_term))
    pe = pe.at[:, 1::2].set(jnp.cos(position * div_term))
    # torch: unsqueeze(0).transpose(1, 2) -> (1, d_model, max_len); drop the
    # leading 1 — the kernel broadcasts over batch itself.
    return pe.T.astype(dtype)                                               # (d_model, max_len)


# ----------------------------------------------------------------------------
# Wrapper
# ----------------------------------------------------------------------------
def _pick_block_rows(B, D, itemsize):
    # ~8 MiB working-set budget: x + out tiles double-buffered plus hash
    # temporaries.  Leaves headroom under v5e's 16 MiB and v7x's 32 MiB default
    # scoped VMEM (and well under v7x's 64 MiB physical VMEM).
    budget_bytes = 8 * 1024 * 1024
    per_row = D * max(itemsize, 4) * 8
    bt = max(1, budget_bytes // per_row)
    if bt >= B:
        return B
    return max(8, (bt // 8) * 8)      # keep the sublane dim a multiple of 8


def positional_encoding_forward(x, pe, *, p=0.1, training=True, seed=0):
    """x: (B, C, L) float; pe: (d_model, max_len) float32; returns (B, C, L)."""
    B, C, L = x.shape
    d_model, max_len = pe.shape
    assert C <= d_model, "channel dim must not exceed d_model"
    assert L == max_len, "torch broadcast requires seq_len == max_len"

    D = C * L
    x2d = x.reshape(B, D)
    pe2d = pe[:C, :].reshape(1, D).astype(jnp.float32)   # == pe[:, :x.size(1)]

    bt = _pick_block_rows(B, D, jnp.dtype(x.dtype).itemsize)
    grid = (pl.cdiv(B, bt),)

    compiler_params = pltpu.CompilerParams(
        dimension_semantics=("parallel",),
        vmem_limit_bytes=32 * 1024 * 1024,
    )
    out_shape = jax.ShapeDtypeStruct((B, D), x.dtype)

    use_dropout = bool(training) and float(p) > 0.0

    if use_dropout:
        seed_arr = jnp.array([seed], dtype=jnp.int32)
        kernel = functools.partial(_pe_dropout_kernel, p=float(p))
        grid_spec = pltpu.PrefetchScalarGridSpec(
            num_scalar_prefetch=1,
            grid=grid,
            in_specs=[
                pl.BlockSpec((bt, D), lambda i, seed_ref: (i, 0)),
                pl.BlockSpec((1, D), lambda i, seed_ref: (0, 0)),
            ],
            out_specs=pl.BlockSpec((bt, D), lambda i, seed_ref: (i, 0)),
        )
        out2d = pl.pallas_call(
            kernel,
            out_shape=out_shape,
            grid_spec=grid_spec,
            compiler_params=compiler_params,
        )(seed_arr, x2d, pe2d)
    else:
        grid_spec = pltpu.PrefetchScalarGridSpec(
            num_scalar_prefetch=0,
            grid=grid,
            in_specs=[
                pl.BlockSpec((bt, D), lambda i: (i, 0)),
                pl.BlockSpec((1, D), lambda i: (0, 0)),
            ],
            out_specs=pl.BlockSpec((bt, D), lambda i: (i, 0)),
        )
        out2d = pl.pallas_call(
            _pe_add_kernel,
            out_shape=out_shape,
            grid_spec=grid_spec,
            compiler_params=compiler_params,
        )(x2d, pe2d)

    return out2d.reshape(B, C, L)


# ----------------------------------------------------------------------------
if __name__ == "__main__":
    # small, module-consistent shapes: batch=2, feature_channel(d_model)=32,
    # data_length(max_len)=16
    B, d_model, max_len = 2, 32, 16
    dropout_p = 0.1

    key = jax.random.PRNGKey(0)
    x = jax.random.normal(key, (B, d_model, max_len), dtype=jnp.float32)

    pe = make_positional_encoding_buffer(d_model, max_len)
    ref = x + pe[None, :, :]

    # eval path (dropout is identity) -- check against a pure-JAX reference
    y_eval = jax.block_until_ready(
        positional_encoding_forward(x, pe, p=dropout_p, training=False)
    )
    assert jnp.allclose(y_eval, ref, atol=1e-6), "eval-path mismatch vs reference"

    # training path (in-kernel inverted dropout, deterministic counter-hash)
    y_train = jax.block_until_ready(
        positional_encoding_forward(x, pe, p=dropout_p, training=True, seed=0)
    )
    assert y_train.shape == x.shape
    kept = y_train != 0.0
    ref_scaled = ref / (1.0 - dropout_p)
    assert jnp.allclose(
        jnp.where(kept, y_train, 0.0), jnp.where(kept, ref_scaled, 0.0), atol=1e-5
    ), "kept elements must equal (x + pe) / (1 - p)"
    drop_frac = float(1.0 - jnp.mean(kept.astype(jnp.float32)))
    assert 0.0 <= drop_frac <= 0.5, f"unexpected drop fraction {drop_frac}"

    print("KERNEL_OK")
</pallas_src>

<mosaic_0001>
module attributes {stable_mosaic.version = 11 : i64} {
  func.func @_pe_add_kernel(%arg0: i32, %arg1: memref<2x512xf32, #tpu.memory_space<vmem>>, %arg2: memref<1x512xf32, #tpu.memory_space<vmem>>, %arg3: memref<2x512xf32, #tpu.memory_space<vmem>>) attributes {dimension_semantics = [#tpu.dimension_semantics<parallel>], iteration_bounds = array<i64: 1>, scalar_prefetch = 0 : i64, scratch_operands = 0 : i64, tpu.core_type = #tpu.core_type<tc>, window_params = [{transform_indices = @transform_0, window_bounds = array<i64: 2, 512>}, {pipeline_mode = #tpu.pipeline_mode<synchronous>, transform_indices = @transform_1, window_bounds = array<i64: 1, 512>}, {transform_indices = @transform_2, window_bounds = array<i64: 2, 512>}]} {
    %c0 = arith.constant 0 : index
    %c0_0 = arith.constant 0 : index
    %0 = vector.load %arg1[%c0, %c0_0] : memref<2x512xf32, #tpu.memory_space<vmem>>, vector<2x512xf32>
    %c0_1 = arith.constant 0 : index
    %c0_2 = arith.constant 0 : index
    %1 = vector.load %arg2[%c0_1, %c0_2] : memref<1x512xf32, #tpu.memory_space<vmem>>, vector<1x512xf32>
    %2 = vector.broadcast %1 : vector<1x512xf32> to vector<2x512xf32>
    %3 = arith.addf %0, %2 : vector<2x512xf32>
    %c0_3 = arith.constant 0 : index
    %c0_4 = arith.constant 0 : index
    %4 = vector.load %arg3[%c0_3, %c0_4] : memref<2x512xf32, #tpu.memory_space<vmem>>, vector<2x512xf32>
    tpu.vector_store %arg3[%c0_3, %c0_4], %3 {strides = array<i32>} : memref<2x512xf32, #tpu.memory_space<vmem>>, vector<2x512xf32>,
    return
  }
  func.func @transform_0(%arg0: i32) -> (i32, i32) {
    %c0_i32 = arith.constant 0 : i32
    %c0_i32_0 = arith.constant 0 : i32
    return %arg0, %c0_i32 : i32, i32
  }
  func.func @transform_1(%arg0: i32) -> (i32, i32) {
    %c0_i32 = arith.constant 0 : i32
    %c0_i32_0 = arith.constant 0 : i32
    %c0_i32_1 = arith.constant 0 : i32
    return %c0_i32, %c0_i32_0 : i32, i32
  }
  func.func @transform_2(%arg0: i32) -> (i32, i32) {
    %c0_i32 = arith.constant 0 : i32
    %c0_i32_0 = arith.constant 0 : i32
    return %arg0, %c0_i32 : i32, i32
  }
}

</mosaic_0001>

<llo_original>
// kernel: tpu_custom_call.1
$region0: #{tpu_custom_call.1}
  #allocation0 [shape = 'u32[]', space=smem, size = 0x4, offset = 0x4, fixed_abs, tag = 'smem constant byte address 0x4 - core index']
  #allocation1 [shape = 'u32[144,128]{1,0:T(1,128)}', space=vmem, size = 0x12000, scoped, tag = 'internal scratch']
  %s0 = inlined_call_operand.hbm [shape: f32[2,512], index: 0, kind: input, shape index: {}]
  %s1 = inlined_call_operand.hbm [shape: f32[1,512], index: 1, kind: input, shape index: {}]
  %s2 = inlined_call_operand.hbm [shape: f32[2,512], index: 2, kind: output, shape index: {}]
  %s3 = sld [smem:[#allocation0]]
  $region26: #{tpu_custom_call.1} parent=0
    _
  %s5 = ssub.s32 1, %s3
  %s6 = scalar_select 0, %s5, %s3
  $region1: #{tpu_custom_call.1} parent=0
    #allocation2 [shape = 'u8[4096]{0}', space=vmem, size = 0x1000, scoped, tag = 'input window, operand 0, single buffered']
    #allocation3 [shape = 's32[1]{0}', space=sflag, size = 0x4, scoped, tag = 'scoped memory for tpu_custom_call.1']
    #allocation4 [shape = 's32[1]{0}', space=sflag, size = 0x4, scoped, tag = 'scoped memory for tpu_custom_call.1']
    #allocation5 [shape = 'u8[2048]{0}', space=vmem, size = 0x800, scoped, tag = 'input window, operand 1, single buffered']
    #allocation6 [shape = 's32[1]{0}', space=sflag, size = 0x4, scoped, tag = 'scoped memory for tpu_custom_call.1']
    #allocation7 [shape = 'u8[4096]{0}', space=vmem, size = 0x1000, scoped, tag = 'output window, operand 0, single buffered']
    %7 = vsyncpa [#allocation3], 0
    %8 = vsyncpa [#allocation6], 0
    %9 = vsyncpa [#allocation4], 0
    // Predicated region
    $region2: #{tpu_custom_call.1} parent=1 // pred_check
      _
    $region3: #{tpu_custom_call.1} parent=1 // pred_check_branch
      %11 = sbr.rel (0) target = $region5
    $region4: #{tpu_custom_call.1} parent=1 // pred_region
      %s13 = ssub.s32 128, 128
      %14 = vsyncadd [#allocation3], %s13
      %s16 = sshll.u32 [#allocation2], 4
      %s17 = int_to_ptr.vmem [resolvable:$true] %s16
      %19 = dma.hbm_to_vmem [thread:$0]  %s0, 128, %s17, [#allocation3]
    $region5: #{tpu_custom_call.1} parent=1 // pred_fallthru
      _
    // Predicated region
    $region6: #{tpu_custom_call.1} parent=1 // pred_check
      _
    $region7: #{tpu_custom_call.1} parent=1 // pred_check_branch
      %21 = sbr.rel (0) target = $region9
    $region8: #{tpu_custom_call.1} parent=1 // pred_region
      %s23 = ssub.s32 64, 64
      %24 = vsyncadd [#allocation6], %s23
      %s26 = sshll.u32 [#allocation5], 4
      %s27 = int_to_ptr.vmem [resolvable:$true] %s26
      %29 = dma.hbm_to_vmem [thread:$0]  %s1, 64, %s27, [#allocation6]
    $region9: #{tpu_custom_call.1} parent=1 // pred_fallthru
      _
    // Predicated region
    $region10: #{tpu_custom_call.1} parent=1 // pred_check
      _
    $region11: #{tpu_custom_call.1} parent=1 // pred_check_branch
      %31 = sbr.rel (0) target = $region13
    $region12: #{tpu_custom_call.1} parent=1 // pred_region
      %32 = dma.done [#allocation3], 128
    $region13: #{tpu_custom_call.1} parent=1 // pred_fallthru
      _
    // Predicated region
    $region14: #{tpu_custom_call.1} parent=1 // pred_check
      _
    $region15: #{tpu_custom_call.1} parent=1 // pred_check_branch
      %34 = sbr.rel (0) target = $region17
    $region16: #{tpu_custom_call.1} parent=1 // pred_region
      %35 = dma.done [#allocation6], 64
    $region17: #{tpu_custom_call.1} parent=1 // pred_fallthru
      _
    %v36 = vld [vmem:[#allocation2] sm:$0xff]
    %v37 = vld [vmem:[#allocation5] sm:$0xf]
    %v39 = vlaneseq
    %v40 = vshrl.u32 %v39, 7
    %v41 = vsub.s32 0, %v40
    %v42 = vrot.slane %v37, %v41
    %v43 = vlaneseq
    %v44 = vshrl.u32 %v43, 7
    %v45 = vsub.s32 1, %v44
    %v46 = vrot.slane %v37, %v45
    %v47 = vlaneseq
    %v48 = vshrl.u32 %v47, 7
    %v49 = vsub.s32 2, %v48
    %v50 = vrot.slane %v37, %v49
    %v51 = vlaneseq
    %v52 = vshrl.u32 %v51, 7
    %v53 = vsub.s32 3, %v52
    %v54 = vrot.slane %v37, %v53
    %v55 = vcombine.low %v42, %v46
    %v56 = vcombine.low %v50, %v54
    %v58 = vunpack.c.l.s4 1983009808
    %v59 = vunpack.c.0.s8 %v58
    %v60 = vlaneseq
    %v61 = vshrl.u32 %v60, 7
    %v62 = vsub.s32 %v59, %v61
    %v63 = vrot.slane %v55, %v62
    %v65 = vunpack.c.l.s4 1983009808
    %v66 = vunpack.c.0.s8 %v65
    %v67 = vlaneseq
    %v68 = vshrl.u32 %v67, 7
    %v69 = vsub.s32 %v66, %v68
    %v70 = vrot.slane %v56, %v69
    %v71 = vcombine.low %v63, %v70
    %v73 = vadd.f32 %v36, %v71
    %74 = vst [vmem:[#allocation7] sm:$0xff] %v73
    // Predicated region
    $region18: #{tpu_custom_call.1} parent=1 // pred_check
      _
    $region19: #{tpu_custom_call.1} parent=1 // pred_check_branch
      %76 = sbr.rel (0) target = $region21
    $region20: #{tpu_custom_call.1} parent=1 // pred_region
      %s78 = ssub.s32 128, 128
      %79 = vsyncadd [#allocation4], %s78
      %s81 = sshll.u32 [#allocation7], 4
      %s82 = int_to_ptr.vmem [resolvable:$true] %s81
      %84 = dma.vmem_to_hbm [thread:$0]  %s82, 128, %s2, [#allocation4]
    $region21: #{tpu_custom_call.1} parent=1 // pred_fallthru
      _
    // Predicated region
    $region22: #{tpu_custom_call.1} parent=1 // pred_check
      _
    $region23: #{tpu_custom_call.1} parent=1 // pred_check_branch
      %86 = sbr.rel (0) target = $region25
    $region24: #{tpu_custom_call.1} parent=1 // pred_region
      %87 = dma.done [#allocation4], 128
    $region25: #{tpu_custom_call.1} parent=1 // pred_fallthru
      _
    %88 = vsyncpa [#allocation3], 1
    %89 = vsyncpa [#allocation6], 1
    %90 = vsyncpa [#allocation4], 1

</llo_original>
